<compile_context>
chip_gen: v5e
topology: v5e:2x2
jax: 0.10.0
libtpu: 0.0.40
codegen_flags: <defaults>
</compile_context>

<pallas_src>
import functools

import jax
import jax.numpy as jnp
from jax.experimental import pallas as pl
from jax.experimental.pallas import tpu as pltpu


def _as_i32(x):
    """Wrap an unsigned 32-bit constant into a Python int valid as int32."""
    x &= 0xFFFFFFFF
    return x - (1 << 32) if x >= (1 << 31) else x


_GOLD = _as_i32(0x9E3779B1)  # odd golden-ratio constant (seed pre-mix)
_M1 = _as_i32(0x7FEB352D)    # lowbias32 multiplier 1
_M2 = _as_i32(0x846CA68B)    # lowbias32 multiplier 2


def _mask_kernel(seed_ref, o_ref, *, thr24, avg_prefix, tile_s, seq_len):
    j = pl.program_id(0)
    shape = o_ref.shape  # (B, tile_s)
    tile_start = j * tile_s

    # Global (row, col) -> flat element index: the counter for the hash.
    # (tile_start is a scalar, so '+ tile_start' is a single vector-scalar add.)
    col = jax.lax.broadcasted_iota(jnp.int32, shape, 1) + tile_start
    row = jax.lax.broadcasted_iota(jnp.int32, shape, 0)
    idx = row * jnp.int32(seq_len) + col

    # Scalar pre-mix of the seed (scalar-core ops, effectively free) so that
    # consecutive seeds give unrelated streams for every element.
    s = seed_ref[0] * jnp.int32(_GOLD)
    s = s ^ jax.lax.shift_right_logical(s, 15)
    s = s * jnp.int32(_M2)

    # Stateless counter hash (lowbias32 finalizer), all int32 VPU ops.
    x = idx ^ s
    x = x ^ jax.lax.shift_right_logical(x, 16)
    x = x * jnp.int32(_M1)
    x = x ^ jax.lax.shift_right_logical(x, 15)
    x = x * jnp.int32(_M2)
    x = x ^ jax.lax.shift_right_logical(x, 16)

    # Integer-domain Bernoulli: top 24 bits vs. precomputed threshold.
    # (Equivalent to `uniform() < masking_ratio` up to 24-bit quantization.)
    u24 = jax.lax.shift_right_logical(x, 8)
    rand_mask = (u24 < jnp.int32(thr24)).astype(o_ref.dtype)

    @pl.when(tile_start >= avg_prefix)
    def _():
        # Fast path: this tile lies entirely past the prefix -> plain store.
        o_ref[...] = rand_mask

    @pl.when(tile_start < avg_prefix)
    def _():
        # Slow path (only the first tile(s)): force columns < avg_prefix to 0.
        o_ref[...] = jnp.where(col >= avg_prefix, rand_mask,
                               jnp.zeros_like(rand_mask))


def mask_maker(shape, seed, *, masking_ratio, avg_prefix, tile_s=None,
               as_bool=False):
    """Pallas equivalent of MaskMaker(masking_ratio, avg_prefix).forward(shape).

    Returns an int8 {0,1} mask by default (nonzero == True) to avoid a second
    full-array HBM pass; pass as_bool=True to get a bool array.
    """
    B, S = shape

    if tile_s is None:
        # Fewest, biggest lane-dense tiles.  Cap the int8 block at ~512 KiB so
        # the double-buffered output plus the int32 hash temporaries fit the
        # 32 MiB scoped-VMEM default on every generation (incl. v7x).
        tile_s = S
        max_lanes = max(128, (512 << 10) // max(B, 1))
        while (tile_s > max_lanes and tile_s % 2 == 0
               and (tile_s // 2) % 128 == 0):
            tile_s //= 2
    assert S % tile_s == 0, "sequence length must be a multiple of tile_s"
    assert tile_s == S or tile_s % 128 == 0, "tile_s must be lane-aligned"

    # masking_ratio quantized to 24 bits (same precision class as an f32
    # uniform draw); bit-exact parity with torch.rand is not expected anyway.
    thr24 = int(round(float(masking_ratio) * (1 << 24)))
    thr24 = max(0, min(thr24, 1 << 24))

    kernel = functools.partial(
        _mask_kernel,
        thr24=thr24,
        avg_prefix=int(avg_prefix),
        tile_s=tile_s,
        seq_len=S,
    )

    grid_spec = pltpu.PrefetchScalarGridSpec(
        num_scalar_prefetch=1,           # the int32 seed lands in SMEM
        grid=(S // tile_s,),
        in_specs=[],
        out_specs=pl.BlockSpec((B, tile_s), lambda j, seed: (0, j)),
    )

    out_i8 = pl.pallas_call(
        kernel,
        out_shape=jax.ShapeDtypeStruct((B, S), jnp.int8),
        grid_spec=grid_spec,
        compiler_params=pltpu.CompilerParams(
            dimension_semantics=("parallel",),
        ),
    )(jnp.asarray([seed], dtype=jnp.int32))

    return out_i8.astype(jnp.bool_) if as_bool else out_i8


if __name__ == "__main__":
    # Deterministic "inputs": a seed derived from PRNGKey(0) plus the shape.
    key = jax.random.PRNGKey(0)
    seed = int(jax.random.randint(key, (), 0, jnp.iinfo(jnp.int32).max))

    B, S = 8, 256                       # small (batch, seq) shape
    masking_ratio = 0.3
    avg_prefix = 16

    mask = mask_maker((B, S), seed,
                      masking_ratio=masking_ratio,
                      avg_prefix=avg_prefix)
    mask = jax.block_until_ready(mask)

    # Sanity checks mirroring the PyTorch semantics (demo-only bool view).
    assert mask.shape == (B, S) and mask.dtype == jnp.int8
    mask_b = mask.astype(jnp.bool_)
    assert not bool(mask_b[:, :avg_prefix].any()), "prefix must be all False"
    frac = float(mask_b[:, avg_prefix:].mean())
    assert 0.1 < frac < 0.5, f"masking fraction looks wrong: {frac}"

    # Determinism check: same (seed, shape) -> identical mask.
    mask2 = jax.block_until_ready(
        mask_maker((B, S), seed, masking_ratio=masking_ratio,
                   avg_prefix=avg_prefix))
    assert bool((mask == mask2).all()), "mask must be deterministic in seed"

    print("KERNEL_OK")
</pallas_src>

<mosaic_0001>
module attributes {stable_mosaic.version = 11 : i64} {
  func.func @_mask_kernel(%arg0: i32, %arg1: memref<1xi32, #tpu.memory_space<smem>>, %arg2: memref<8x256xi8, #tpu.memory_space<vmem>>) attributes {dimension_semantics = [#tpu.dimension_semantics<parallel>], iteration_bounds = array<i64: 1>, scalar_prefetch = 1 : i64, scratch_operands = 0 : i64, tpu.core_type = #tpu.core_type<tc>, window_params = [{transform_indices = @transform_0, window_bounds = array<i64: 8, 256>}]} {
    %c256_i32 = arith.constant 256 : i32
    %0 = arith.muli %arg0, %c256_i32 : i32
    %1 = tpu.iota {dimensions = array<i32: 1>} : vector<8x256xi32>
    %2 = vector.broadcast %0 : i32 to vector<8x256xi32>
    %3 = arith.addi %1, %2 : vector<8x256xi32>
    %4 = tpu.iota {dimensions = array<i32: 0>} : vector<8x256xi32>
    %c256_i32_0 = arith.constant 256 : i32
    %5 = vector.broadcast %c256_i32_0 : i32 to vector<8x256xi32>
    %6 = arith.muli %4, %5 : vector<8x256xi32>
    %7 = arith.addi %6, %3 : vector<8x256xi32>
    %c0 = arith.constant 0 : index
    %8 = memref.load %arg1[%c0] : memref<1xi32, #tpu.memory_space<smem>>
    %c-1640531535_i32 = arith.constant -1640531535 : i32
    %9 = arith.muli %8, %c-1640531535_i32 : i32
    %c15_i32 = arith.constant 15 : i32
    %10 = arith.shrui %9, %c15_i32 : i32
    %11 = arith.xori %9, %10 : i32
    %c-2073254261_i32 = arith.constant -2073254261 : i32
    %12 = arith.muli %11, %c-2073254261_i32 : i32
    %13 = vector.broadcast %12 : i32 to vector<8x256xi32>
    %14 = arith.xori %7, %13 : vector<8x256xi32>
    %c16_i32 = arith.constant 16 : i32
    %15 = vector.broadcast %c16_i32 : i32 to vector<8x256xi32>
    %16 = arith.shrui %14, %15 : vector<8x256xi32>
    %17 = arith.xori %14, %16 : vector<8x256xi32>
    %c2146121005_i32 = arith.constant 2146121005 : i32
    %18 = vector.broadcast %c2146121005_i32 : i32 to vector<8x256xi32>
    %19 = arith.muli %17, %18 : vector<8x256xi32>
    %c15_i32_1 = arith.constant 15 : i32
    %20 = vector.broadcast %c15_i32_1 : i32 to vector<8x256xi32>
    %21 = arith.shrui %19, %20 : vector<8x256xi32>
    %22 = arith.xori %19, %21 : vector<8x256xi32>
    %c-2073254261_i32_2 = arith.constant -2073254261 : i32
    %23 = vector.broadcast %c-2073254261_i32_2 : i32 to vector<8x256xi32>
    %24 = arith.muli %22, %23 : vector<8x256xi32>
    %c16_i32_3 = arith.constant 16 : i32
    %25 = vector.broadcast %c16_i32_3 : i32 to vector<8x256xi32>
    %26 = arith.shrui %24, %25 : vector<8x256xi32>
    %27 = arith.xori %24, %26 : vector<8x256xi32>
    %c8_i32 = arith.constant 8 : i32
    %28 = vector.broadcast %c8_i32 : i32 to vector<8x256xi32>
    %29 = arith.shrui %27, %28 : vector<8x256xi32>
    %c5033165_i32 = arith.constant 5033165 : i32
    %30 = vector.broadcast %c5033165_i32 : i32 to vector<8x256xi32>
    %31 = arith.cmpi slt, %29, %30 : vector<8x256xi32>
    %32 = arith.extui %31 : vector<8x256xi1> to vector<8x256xi8>
    %c16_i32_4 = arith.constant 16 : i32
    %33 = arith.cmpi sge, %0, %c16_i32_4 : i32
    %34 = arith.extui %33 : i1 to i32
    %c0_i32 = arith.constant 0 : i32
    %35 = arith.cmpi ne, %34, %c0_i32 : i32
    scf.if %35 {
      %c0_7 = arith.constant 0 : index
      %c0_8 = arith.constant 0 : index
      %39 = vector.load %arg2[%c0_7, %c0_8] : memref<8x256xi8, #tpu.memory_space<vmem>>, vector<8x256xi8>
      tpu.vector_store %arg2[%c0_7, %c0_8], %32 {strides = array<i32>} : memref<8x256xi8, #tpu.memory_space<vmem>>, vector<8x256xi8>,
    } else {
    }
    %c16_i32_5 = arith.constant 16 : i32
    %36 = arith.cmpi slt, %0, %c16_i32_5 : i32
    %37 = arith.extui %36 : i1 to i32
    %c0_i32_6 = arith.constant 0 : i32
    %38 = arith.cmpi ne, %37, %c0_i32_6 : i32
    scf.if %38 {
      %c16_i32_7 = arith.constant 16 : i32
      %39 = vector.broadcast %c16_i32_7 : i32 to vector<8x256xi32>
      %40 = arith.cmpi sge, %3, %39 : vector<8x256xi32>
      %c0_i8 = arith.constant 0 : i8
      %41 = vector.broadcast %c0_i8 : i8 to vector<8x256xi8>
      %42 = arith.select %40, %32, %41 : vector<8x256xi1>, vector<8x256xi8>
      %c0_8 = arith.constant 0 : index
      %c0_9 = arith.constant 0 : index
      %43 = vector.load %arg2[%c0_8, %c0_9] : memref<8x256xi8, #tpu.memory_space<vmem>>, vector<8x256xi8>
      tpu.vector_store %arg2[%c0_8, %c0_9], %42 {strides = array<i32>} : memref<8x256xi8, #tpu.memory_space<vmem>>, vector<8x256xi8>,
    } else {
    }
    return
  }
  func.func @transform_0(%arg0: i32, %arg1: memref<1xi32, #tpu.memory_space<smem>>) -> (i32, i32) {
    %c0_i32 = arith.constant 0 : i32
    %c0_i32_0 = arith.constant 0 : i32
    return %c0_i32, %arg0 : i32, i32
  }
}

</mosaic_0001>

<llo_original>
// kernel: tpu_custom_call.1
$region0: #{tpu_custom_call.1}
  #allocation0 [shape = 'u32[]', space=smem, size = 0x4, offset = 0x4, fixed_abs, tag = 'smem constant byte address 0x4 - core index']
  #allocation1 [shape = 'u32[72,128]{1,0:T(1,128)}', space=vmem, size = 0x9000, scoped, tag = 'internal scratch']
  #allocation2 [shape = 's32[1]{0}', space=sflag, size = 0x4, scoped, tag = 'scoped memory for tpu_custom_call.1']
  #allocation3 [shape = 's32[1]{0:T(128)S(6)}', space=smem, size = 0x200, scoped, tag = 'prefetched SMEM operand 0']
  %s0 = inlined_call_operand.<no memory space> [shape: s32[1], index: 0, kind: input, shape index: {}]
  %s1 = inlined_call_operand.hbm [shape: s8[8,256], index: 1, kind: output, shape index: {}]
  %s2 = sld [smem:[#allocation0]]
  $region18: #{tpu_custom_call.1} parent=0
    _
  %s4 = ssub.s32 1, %s2
  %s5 = scalar_select 0, %s4, %s2
  %6 = sst [smem:[#allocation3]] %s0
  $region1: #{tpu_custom_call.1} parent=0
    #allocation4 [shape = 'u8[2048]{0}', space=vmem, size = 0x800, scoped, tag = 'output window, operand 0, single buffered']
    #allocation5 [shape = 's32[1]{0}', space=sflag, size = 0x4, scoped, tag = 'scoped memory for tpu_custom_call.1']
    %7 = vsyncpa [#allocation5], 0
    %s10 = smul.u32 0, 256
    %v11 = vlaneseq
    %v12 = vand.u32 %v11, 127
    %v13 = vadd.s32 %v12, 128
    %v14 = vstv %s10
    %v15 = vadd.s32 %v12, %v14
    %v16 = vadd.s32 %v13, %v14
    %v17 = vlaneseq
    %v18 = vshrl.u32 %v17, 7
    %v19 = vmul.u32 %v18, 256
    %v20 = vadd.s32 %v19, %v15
    %v21 = vadd.s32 %v19, %v16
    %s22 = sld [smem:[#allocation3]]
    %s23 = smul.u32 %s22, 2654435761
    %s24 = sshrl.u32 %s23, 15
    %s25 = sxor.u32 %s23, %s24
    %s26 = smul.u32 %s25, 2221713035
    %v27 = vstv %s26
    %v28 = vxor.u32 %v20, %v27
    %v29 = vxor.u32 %v21, %v27
    %v30 = vshrl.u32 %v28, 16
    %v31 = vshrl.u32 %v29, 16
    %v32 = vxor.u32 %v28, %v30
    %v33 = vxor.u32 %v29, %v31
    %v34 = vmul.u32 %v32, 2146121005
    %v35 = vmul.u32 %v33, 2146121005
    %v36 = vshrl.u32 %v34, 15
    %v37 = vshrl.u32 %v35, 15
    %v38 = vxor.u32 %v34, %v36
    %v39 = vxor.u32 %v35, %v37
    %v40 = vmul.u32 %v38, 2221713035
    %v41 = vmul.u32 %v39, 2221713035
    %v42 = vshrl.u32 %v40, 16
    %v43 = vshrl.u32 %v41, 16
    %v44 = vxor.u32 %v40, %v42
    %v45 = vxor.u32 %v41, %v43
    %v46 = vshrl.u32 %v44, 8
    %v47 = vshrl.u32 %v45, 8
    %vm48 = vcmp.lt.s32.totalorder %v46, 5033165
    %vm49 = vcmp.lt.s32.totalorder %v47, 5033165
    %vm50 = vmpackc.low %vm48, %vm48
    %v51 = vsel %vm50, 16711935, 0
    %v52 = vsel %vm50, 16711935, 0
    %v53 = vpack.c.b8 %v52, %v51
    %vm54 = vnez %v53
    %vm55 = vmpackc.low %vm49, %vm49
    %v56 = vsel %vm55, 16711935, 0
    %v57 = vsel %vm55, 16711935, 0
    %v58 = vpack.c.b8 %v57, %v56
    %vm59 = vnez %v58
    %v60 = vsel %vm54, 16843009, 0
    %v61 = vsel %vm59, 16843009, 0
    %p62 = scmp.ge.s32.totalorder %s10, 16
    // Predicated region
    $region2: #{tpu_custom_call.1} parent=1 // pred_check
      %p63 = pneg %p62
    $region3: #{tpu_custom_call.1} parent=1 // pred_check_branch
      %65 = sbr.rel (%p63) target = $region5
    $region4: #{tpu_custom_call.1} parent=1 // pred_region
      %v66 = vunpack.c.0.s8 %v60
      %v67 = vunpack.c.0.s8 %v61
      %v68 = vpack.c.b16 %v67, %v66
      %v69 = vpack.c.b8 %v68, %v68
      %70 = vst [vmem:[#allocation4] sm:$0xf] %v69
    $region5: #{tpu_custom_call.1} parent=1 // pred_fallthru
      _
    %p71 = scmp.lt.s32.totalorder %s10, 16
    // Predicated region
    $region6: #{tpu_custom_call.1} parent=1 // pred_check
      %p72 = pneg %p71
    $region7: #{tpu_custom_call.1} parent=1 // pred_check_branch
      %74 = sbr.rel (%p72) target = $region9
    $region8: #{tpu_custom_call.1} parent=1 // pred_region
      %vm75 = vcmp.ge.s32.totalorder %v15, 16
      %vm76 = vcmp.ge.s32.totalorder %v16, 16
      %vm77 = vmpackc.low %vm76, %vm75
      %v78 = vsel %vm77, 16711935, 0
      %v79 = vsel %vm77, 16711935, 0
      %v80 = vpack.c.b8 %v79, %v78
      %vm81 = vnez %v80
      %v82 = vsel %vm81, 16843009, 0
      %v83 = vperm.slane %v82, 0
      %v84 = vperm.slane %v82, 2
      %vm85 = vnez %v83
      %vm86 = vnez %v84
      %v87 = vsel %vm85, %v60, 0
      %v88 = vsel %vm86, %v61, 0
      %v89 = vunpack.c.0.s8 %v87
      %v90 = vunpack.c.0.s8 %v88
      %v91 = vpack.c.b16 %v90, %v89
      %v92 = vpack.c.b8 %v91, %v91
      %93 = vst [vmem:[#allocation4] sm:$0xf] %v92
    $region9: #{tpu_custom_call.1} parent=1 // pred_fallthru
      _
    // Predicated region
    $region10: #{tpu_custom_call.1} parent=1 // pred_check
      _
    $region11: #{tpu_custom_call.1} parent=1 // pred_check_branch
      %95 = sbr.rel (0) target = $region13
    $region12: #{tpu_custom_call.1} parent=1 // pred_region
      %97 = vsyncadd [#allocation5], 0
      %s99 = sshll.u32 [#allocation4], 4
      %s100 = int_to_ptr.vmem [resolvable:$true] %s99
      %s101 = sshll.u32 %s1, 4
      %s102 = int_to_ptr.hbm [resolvable:$true] %s101
      %104 = dma.vmem_to_hbm [thread:$0]  %s100, 64, %s102, [#allocation5]
    $region13: #{tpu_custom_call.1} parent=1 // pred_fallthru
      _
    // Predicated region
    $region14: #{tpu_custom_call.1} parent=1 // pred_check
      _
    $region15: #{tpu_custom_call.1} parent=1 // pred_check_branch
      %106 = sbr.rel (0) target = $region17
    $region16: #{tpu_custom_call.1} parent=1 // pred_region
      %108 = dma.done [#allocation5], 64
    $region17: #{tpu_custom_call.1} parent=1 // pred_fallthru
      _
    %109 = vsyncpa [#allocation5], 1

</llo_original>
